<compile_context>
chip_gen: v5e
topology: v5e:2x2
jax: 0.10.0
libtpu: 0.0.40
codegen_flags: <defaults>
</compile_context>

<pallas_src>
from functools import partial

import jax
import jax.numpy as jnp
from jax import lax
from jax.experimental import pallas as pl
from jax.experimental.pallas import tpu as pltpu

_VMEM_LIMIT = 32 * 1024 * 1024          # scoped VMEM limit requested everywhere
_FUSED_VMEM_BUDGET = 26 * 1024 * 1024   # conservative gate for the fused path
_BLOCK_TARGET_BYTES = 2 * 1024 * 1024   # ~2 MiB (f32) per streamed block


# ---------------------------------------------------------------------------
# Kernels
# ---------------------------------------------------------------------------
def _bn_fused_kernel(x_ref, gamma_ref, beta_ref, o_ref, mean_ref, var_ref, *,
                     nhw, eps):
    """Single-pass BN for one channel tile: the (B, tc, hw) slab is VMEM
    resident, so x is read from HBM exactly once (2N bytes total traffic)."""
    x = x_ref[...].astype(jnp.float32)                          # [B, tc, hw]
    inv_n = 1.0 / nhw
    s = jnp.sum(jnp.sum(x, axis=0), axis=1, keepdims=True)      # [tc, 1]
    q = jnp.sum(jnp.sum(x * x, axis=0), axis=1, keepdims=True)  # [tc, 1]
    mean = s * inv_n
    var = jnp.maximum(q * inv_n - mean * mean, 0.0)             # clamp cancellation
    scale = gamma_ref[...] * lax.rsqrt(var + eps)               # EUP rsqrt
    bias = beta_ref[...] - mean * scale
    o_ref[...] = (x * scale[None, :, :] + bias[None, :, :]).astype(o_ref.dtype)
    mean_ref[...] = mean
    var_ref[...] = var


def _bn_stats_kernel(x_ref, sum_ref, sq_ref, *, hw, thw, needs_mask):
    """Accumulate per-channel sum / sum-of-squares directly into the resident
    [tc,1] output blocks over the (B, HW-tile) reduction axes."""
    b = pl.program_id(1)
    t = pl.program_id(2)

    @pl.when(jnp.logical_and(b == 0, t == 0))
    def _init():
        sum_ref[...] = jnp.zeros_like(sum_ref)
        sq_ref[...] = jnp.zeros_like(sq_ref)

    x = x_ref[0].astype(jnp.float32)                       # [tc, thw]
    if needs_mask:  # masked tail tile (hw not a multiple of thw)
        col = t * thw + lax.broadcasted_iota(jnp.int32, x.shape, 1)
        x = jnp.where(col < hw, x, 0.0)
    sum_ref[...] += jnp.sum(x, axis=1, keepdims=True)
    sq_ref[...] += jnp.sum(x * x, axis=1, keepdims=True)


def _bn_norm_kernel(x_ref, mean_ref, var_ref, gamma_ref, beta_ref, o_ref, *, eps):
    """out = x * scale + bias; scale/bias derived in-kernel from per-channel
    mean/var/gamma/beta [tc,1] blocks (rsqrt on the EUP, effectively free)."""
    scale = gamma_ref[...] * lax.rsqrt(var_ref[...] + eps)   # [tc, 1]
    bias = beta_ref[...] - mean_ref[...] * scale
    x = x_ref[0].astype(jnp.float32)                         # [tc, thw]
    o_ref[0] = (x * scale + bias).astype(o_ref.dtype)


# ---------------------------------------------------------------------------
# Tile selection helpers
# ---------------------------------------------------------------------------
def _fused_channel_tile(B, C, hw, itemsize):
    """Largest channel tile whose fused slab fits the VMEM budget, preferring
    >= 2 tiles so both v7x TensorCores get work.  None => streamed path."""
    if C % 8 == 0 and C >= 16:
        cands = [t for t in range(((C // 2) // 8) * 8, 7, -8) if C % t == 0]
        cands.append(C)   # single-tile fused (2N bytes) still beats two passes
    else:
        cands = [C]       # tc == full C is always a legal block dim
    for tc in cands:
        slab = B * tc * hw
        # 2x double-buffered in + out blocks, plus f32 temporaries.
        est = 4 * slab * itemsize + 3 * slab * 4
        if est <= _FUSED_VMEM_BUDGET:
            return tc
    return None


def _pick_channel_tile(C):
    """Sublane (channel) tile for the streamed path: multiple of 8 dividing C,
    capped at 256, preferring >= 2 tiles when possible."""
    if C % 8 != 0:
        return C
    cap = C if C < 16 else min(256, C // 2)
    cap -= cap % 8
    for t in range(cap, 7, -8):
        if C % t == 0:
            return t
    return C


def _pick_hw_tile(hw, tc):
    """Lane (H*W) tile for the streamed path, ~2 MiB f32 per block."""
    if tc * hw * 4 <= _BLOCK_TARGET_BYTES:
        return hw                                   # full axis, no tail masking
    cols = (_BLOCK_TARGET_BYTES // (tc * 4)) // 128 * 128
    return max(128, cols)                           # multiple of 128; masked tail


# ---------------------------------------------------------------------------
# Wrapper
# ---------------------------------------------------------------------------
def batch_norm_2d(x, gamma, beta, exp_mean, exp_var, *, eps=1e-5, momentum=0.1,
                  training=True, track_running_stats=True, allow_fused=True):
    """Forward of BatchNorm2d. x: [B, C, H, W] (NCHW, like PyTorch).
    Returns (out, new_exp_mean, new_exp_var)."""
    B, C, H, W = x.shape
    hw = H * W
    nhw = B * hw
    elt = jnp.dtype(x.dtype).itemsize

    x3 = x.reshape(B, C, hw)                          # free view, no transpose
    gamma_c = gamma.astype(jnp.float32).reshape(C, 1)
    beta_c = beta.astype(jnp.float32).reshape(C, 1)

    compute_stats = training or not track_running_stats

    tc_f = _fused_channel_tile(B, C, hw, elt) if (compute_stats and allow_fused) else None

    if tc_f is not None:
        # ---- fused single-pass fast path: 1 read + 1 write of x ----------
        nc = C // tc_f
        out3, mean2, var2 = pl.pallas_call(
            partial(_bn_fused_kernel, nhw=float(nhw), eps=float(eps)),
            grid=(nc,),
            in_specs=[
                pl.BlockSpec((B, tc_f, hw), lambda c: (0, c, 0)),
                pl.BlockSpec((tc_f, 1), lambda c: (c, 0)),
                pl.BlockSpec((tc_f, 1), lambda c: (c, 0)),
            ],
            out_specs=[
                pl.BlockSpec((B, tc_f, hw), lambda c: (0, c, 0)),
                pl.BlockSpec((tc_f, 1), lambda c: (c, 0)),
                pl.BlockSpec((tc_f, 1), lambda c: (c, 0)),
            ],
            out_shape=[
                jax.ShapeDtypeStruct((B, C, hw), x.dtype),
                jax.ShapeDtypeStruct((C, 1), jnp.float32),
                jax.ShapeDtypeStruct((C, 1), jnp.float32),
            ],
            compiler_params=pltpu.CompilerParams(
                dimension_semantics=("parallel",),
                vmem_limit_bytes=_VMEM_LIMIT),
            cost_estimate=pl.CostEstimate(
                flops=5 * B * C * hw, transcendentals=C,
                bytes_accessed=2 * B * C * hw * elt + 4 * C * 4),
        )(x3, gamma_c, beta_c)
        mean = mean2[:, 0]
        var = var2[:, 0]
    else:
        # ---- streamed two-pass path ---------------------------------------
        tc = _pick_channel_tile(C)
        thw = _pick_hw_tile(hw, tc)
        nt = -(-hw // thw)
        needs_mask = (hw % thw) != 0
        grid = (C // tc, B, nt)

        if compute_stats:
            sums, sqs = pl.pallas_call(
                partial(_bn_stats_kernel, hw=hw, thw=thw, needs_mask=needs_mask),
                grid=grid,
                in_specs=[pl.BlockSpec((1, tc, thw), lambda c, b, t: (b, c, t))],
                out_specs=[
                    pl.BlockSpec((tc, 1), lambda c, b, t: (c, 0)),
                    pl.BlockSpec((tc, 1), lambda c, b, t: (c, 0)),
                ],
                out_shape=[
                    jax.ShapeDtypeStruct((C, 1), jnp.float32),
                    jax.ShapeDtypeStruct((C, 1), jnp.float32),
                ],
                compiler_params=pltpu.CompilerParams(
                    dimension_semantics=("parallel", "arbitrary", "arbitrary"),
                    vmem_limit_bytes=_VMEM_LIMIT),
                cost_estimate=pl.CostEstimate(
                    flops=3 * B * C * hw, transcendentals=0,
                    bytes_accessed=B * C * hw * elt + 2 * C * 4),
            )(x3)
            mean = sums[:, 0] / nhw
            var = jnp.maximum(sqs[:, 0] / nhw - mean * mean, 0.0)
        else:
            mean = exp_mean.astype(jnp.float32)
            var = jnp.maximum(exp_var.astype(jnp.float32), 0.0)

        mean_c = mean.reshape(C, 1)
        var_c = var.reshape(C, 1)
        out3 = pl.pallas_call(
            partial(_bn_norm_kernel, eps=float(eps)),
            grid=grid,
            in_specs=[
                pl.BlockSpec((1, tc, thw), lambda c, b, t: (b, c, t)),
                pl.BlockSpec((tc, 1), lambda c, b, t: (c, 0)),
                pl.BlockSpec((tc, 1), lambda c, b, t: (c, 0)),
                pl.BlockSpec((tc, 1), lambda c, b, t: (c, 0)),
                pl.BlockSpec((tc, 1), lambda c, b, t: (c, 0)),
            ],
            out_specs=pl.BlockSpec((1, tc, thw), lambda c, b, t: (b, c, t)),
            out_shape=jax.ShapeDtypeStruct((B, C, hw), x.dtype),
            compiler_params=pltpu.CompilerParams(
                dimension_semantics=("parallel", "parallel", "parallel"),
                vmem_limit_bytes=_VMEM_LIMIT),
            cost_estimate=pl.CostEstimate(
                flops=2 * B * C * hw, transcendentals=C,
                bytes_accessed=2 * B * C * hw * elt + 4 * C * 4),
        )(x3, mean_c, var_c, gamma_c, beta_c)

    out = out3.reshape(B, C, H, W)

    if training and track_running_stats:
        new_exp_mean = ((1.0 - momentum) * exp_mean
                        + momentum * mean.astype(exp_mean.dtype))
        new_exp_var = ((1.0 - momentum) * exp_var
                       + momentum * var.astype(exp_var.dtype))
    else:
        new_exp_mean, new_exp_var = exp_mean, exp_var
    return out, new_exp_mean, new_exp_var


# ---------------------------------------------------------------------------
if __name__ == "__main__":
    B, C, H, W = 2, 4, 16, 16
    key = jax.random.PRNGKey(0)
    x = jax.random.normal(key, (B, C, H, W), dtype=jnp.float32)

    # Deterministic parameter / buffer init (matches nn.Module __init__):
    gamma = jnp.ones((C,), jnp.float32)      # nn.Parameter(torch.ones(C))
    beta = jnp.zeros((C,), jnp.float32)      # nn.Parameter(torch.zeros(C))
    exp_mean = jnp.zeros((C,), jnp.float32)  # running mean buffer
    exp_var = jnp.ones((C,), jnp.float32)    # running var buffer

    eps = 1e-5
    mom = 0.1

    # Pure-JAX reference (same math as the PyTorch forward's intended path).
    xr = x.reshape(B, C, -1)
    m = xr.mean(axis=(0, 2))
    v = (xr ** 2).mean(axis=(0, 2)) - m ** 2
    ref = (xr - m[None, :, None]) / jnp.sqrt(v[None, :, None] + eps)
    ref = (gamma[None, :, None] * ref + beta[None, :, None]).reshape(B, C, H, W)

    # 1) fused single-pass path (default at this slab size)
    out, nm, nv = batch_norm_2d(x, gamma, beta, exp_mean, exp_var,
                                eps=eps, momentum=mom,
                                training=True, track_running_stats=True)
    jax.block_until_ready(out)
    assert jnp.allclose(out, ref, atol=1e-5, rtol=1e-5)
    assert jnp.allclose(nm, (1 - mom) * exp_mean + mom * m, atol=1e-5)
    assert jnp.allclose(nv, (1 - mom) * exp_var + mom * v, atol=1e-5)

    # 2) streamed two-pass path (forced, exercises the large-shape kernels)
    out2, nm2, nv2 = batch_norm_2d(x, gamma, beta, exp_mean, exp_var,
                                   eps=eps, momentum=mom,
                                   training=True, track_running_stats=True,
                                   allow_fused=False)
    jax.block_until_ready(out2)
    assert jnp.allclose(out2, ref, atol=1e-5, rtol=1e-5)
    assert jnp.allclose(nm2, nm, atol=1e-5)
    assert jnp.allclose(nv2, nv, atol=1e-5)

    # 3) eval path (uses running statistics; running buffers unchanged)
    out3, _, _ = batch_norm_2d(x, gamma, beta, exp_mean, exp_var,
                               eps=eps, momentum=mom,
                               training=False, track_running_stats=True)
    jax.block_until_ready(out3)
    ref_eval = ((xr - exp_mean[None, :, None])
                / jnp.sqrt(exp_var[None, :, None] + eps))
    ref_eval = (gamma[None, :, None] * ref_eval
                + beta[None, :, None]).reshape(B, C, H, W)
    assert jnp.allclose(out3, ref_eval, atol=1e-5, rtol=1e-5)

    print("KERNEL_OK")
</pallas_src>

<mosaic_0001>
module attributes {stable_mosaic.version = 11 : i64} {
  func.func @_bn_fused_kernel(%arg0: i32, %arg1: memref<2x4x256xf32, #tpu.memory_space<vmem>>, %arg2: memref<4x1xf32, #tpu.memory_space<vmem>>, %arg3: memref<4x1xf32, #tpu.memory_space<vmem>>, %arg4: memref<2x4x256xf32, #tpu.memory_space<vmem>>, %arg5: memref<4x1xf32, #tpu.memory_space<vmem>>, %arg6: memref<4x1xf32, #tpu.memory_space<vmem>>) attributes {dimension_semantics = [#tpu.dimension_semantics<parallel>], iteration_bounds = array<i64: 1>, scalar_prefetch = 0 : i64, scratch_operands = 0 : i64, tpu.core_type = #tpu.core_type<tc>, window_params = [{transform_indices = @transform_0, window_bounds = array<i64: 2, 4, 256>}, {transform_indices = @transform_1, window_bounds = array<i64: 4, 1>}, {transform_indices = @transform_2, window_bounds = array<i64: 4, 1>}, {transform_indices = @transform_3, window_bounds = array<i64: 2, 4, 256>}, {transform_indices = @transform_4, window_bounds = array<i64: 4, 1>}, {transform_indices = @transform_5, window_bounds = array<i64: 4, 1>}]} {
    %c0 = arith.constant 0 : index
    %c0_0 = arith.constant 0 : index
    %c0_1 = arith.constant 0 : index
    %0 = vector.load %arg1[%c0, %c0_0, %c0_1] : memref<2x4x256xf32, #tpu.memory_space<vmem>>, vector<2x4x256xf32>
    %cst = arith.constant dense<0.000000e+00> : vector<4x256xf32>
    %1 = vector.multi_reduction <add>, %0, %cst [0] : vector<2x4x256xf32> to vector<4x256xf32>
    %cst_2 = arith.constant dense<0.000000e+00> : vector<4xf32>
    %2 = vector.multi_reduction <add>, %1, %cst_2 [1] : vector<4x256xf32> to vector<4xf32>
    %3 = vector.shape_cast %2 : vector<4xf32> to vector<4x1xf32>
    %4 = arith.mulf %0, %0 : vector<2x4x256xf32>
    %cst_3 = arith.constant dense<0.000000e+00> : vector<4x256xf32>
    %5 = vector.multi_reduction <add>, %4, %cst_3 [0] : vector<2x4x256xf32> to vector<4x256xf32>
    %cst_4 = arith.constant dense<0.000000e+00> : vector<4xf32>
    %6 = vector.multi_reduction <add>, %5, %cst_4 [1] : vector<4x256xf32> to vector<4xf32>
    %7 = vector.shape_cast %6 : vector<4xf32> to vector<4x1xf32>
    %cst_5 = arith.constant 0.001953125 : f32
    %8 = vector.broadcast %cst_5 : f32 to vector<4x1xf32>
    %9 = arith.mulf %3, %8 : vector<4x1xf32>
    %cst_6 = arith.constant 0.001953125 : f32
    %10 = vector.broadcast %cst_6 : f32 to vector<4x1xf32>
    %11 = arith.mulf %7, %10 : vector<4x1xf32>
    %12 = arith.mulf %9, %9 : vector<4x1xf32>
    %13 = arith.subf %11, %12 : vector<4x1xf32>
    %cst_7 = arith.constant 0.000000e+00 : f32
    %14 = vector.broadcast %cst_7 : f32 to vector<4x1xf32>
    %15 = arith.maximumf %13, %14 : vector<4x1xf32>
    %c0_8 = arith.constant 0 : index
    %c0_9 = arith.constant 0 : index
    %16 = vector.load %arg2[%c0_8, %c0_9] : memref<4x1xf32, #tpu.memory_space<vmem>>, vector<4x1xf32>
    %cst_10 = arith.constant 9.99999974E-6 : f32
    %17 = vector.broadcast %cst_10 : f32 to vector<4x1xf32>
    %18 = arith.addf %15, %17 : vector<4x1xf32>
    %19 = math.rsqrt %18 : vector<4x1xf32>
    %20 = arith.mulf %16, %19 : vector<4x1xf32>
    %c0_11 = arith.constant 0 : index
    %c0_12 = arith.constant 0 : index
    %21 = vector.load %arg3[%c0_11, %c0_12] : memref<4x1xf32, #tpu.memory_space<vmem>>, vector<4x1xf32>
    %22 = arith.mulf %9, %20 : vector<4x1xf32>
    %23 = arith.subf %21, %22 : vector<4x1xf32>
    %24 = vector.shape_cast %20 : vector<4x1xf32> to vector<1x4x1xf32>
    %25 = vector.broadcast %24 : vector<1x4x1xf32> to vector<2x4x256xf32>
    %26 = arith.mulf %0, %25 : vector<2x4x256xf32>
    %27 = vector.shape_cast %23 : vector<4x1xf32> to vector<1x4x1xf32>
    %28 = vector.broadcast %27 : vector<1x4x1xf32> to vector<2x4x256xf32>
    %29 = arith.addf %26, %28 : vector<2x4x256xf32>
    %c0_13 = arith.constant 0 : index
    %c0_14 = arith.constant 0 : index
    %c0_15 = arith.constant 0 : index
    %30 = vector.load %arg4[%c0_13, %c0_14, %c0_15] : memref<2x4x256xf32, #tpu.memory_space<vmem>>, vector<2x4x256xf32>
    tpu.vector_store %arg4[%c0_13, %c0_14, %c0_15], %29 {strides = array<i32>} : memref<2x4x256xf32, #tpu.memory_space<vmem>>, vector<2x4x256xf32>,
    %c0_16 = arith.constant 0 : index
    %c0_17 = arith.constant 0 : index
    %31 = vector.load %arg5[%c0_16, %c0_17] : memref<4x1xf32, #tpu.memory_space<vmem>>, vector<4x1xf32>
    tpu.vector_store %arg5[%c0_16, %c0_17], %9 {strides = array<i32>} : memref<4x1xf32, #tpu.memory_space<vmem>>, vector<4x1xf32>,
    %c0_18 = arith.constant 0 : index
    %c0_19 = arith.constant 0 : index
    %32 = vector.load %arg6[%c0_18, %c0_19] : memref<4x1xf32, #tpu.memory_space<vmem>>, vector<4x1xf32>
    tpu.vector_store %arg6[%c0_18, %c0_19], %15 {strides = array<i32>} : memref<4x1xf32, #tpu.memory_space<vmem>>, vector<4x1xf32>,
    return
  }
  func.func @transform_0(%arg0: i32) -> (i32, i32, i32) {
    %c0_i32 = arith.constant 0 : i32
    %c0_i32_0 = arith.constant 0 : i32
    %c0_i32_1 = arith.constant 0 : i32
    return %c0_i32, %arg0, %c0_i32_0 : i32, i32, i32
  }
  func.func @transform_1(%arg0: i32) -> (i32, i32) {
    %c0_i32 = arith.constant 0 : i32
    %c0_i32_0 = arith.constant 0 : i32
    return %arg0, %c0_i32 : i32, i32
  }
  func.func @transform_2(%arg0: i32) -> (i32, i32) {
    %c0_i32 = arith.constant 0 : i32
    %c0_i32_0 = arith.constant 0 : i32
    return %arg0, %c0_i32 : i32, i32
  }
  func.func @transform_3(%arg0: i32) -> (i32, i32, i32) {
    %c0_i32 = arith.constant 0 : i32
    %c0_i32_0 = arith.constant 0 : i32
    %c0_i32_1 = arith.constant 0 : i32
    return %c0_i32, %arg0, %c0_i32_0 : i32, i32, i32
  }
  func.func @transform_4(%arg0: i32) -> (i32, i32) {
    %c0_i32 = arith.constant 0 : i32
    %c0_i32_0 = arith.constant 0 : i32
    return %arg0, %c0_i32 : i32, i32
  }
  func.func @transform_5(%arg0: i32) -> (i32, i32) {
    %c0_i32 = arith.constant 0 : i32
    %c0_i32_0 = arith.constant 0 : i32
    return %arg0, %c0_i32 : i32, i32
  }
}

</mosaic_0001>

<llo_original>
// kernel: tpu_custom_call.1
$region0: #{tpu_custom_call.1}
  #allocation0 [shape = 'u32[]', space=smem, size = 0x4, offset = 0x4, fixed_abs, tag = 'smem constant byte address 0x4 - core index']
  #allocation1 [shape = 'u32[72,128]{1,0:T(1,128)}', space=vmem, size = 0x9000, scoped, tag = 'internal scratch']
  %s0 = inlined_call_operand.hbm [shape: f32[2,4,256], index: 0, kind: input, shape index: {}]
  %s1 = inlined_call_operand.vmem [shape: f32[4,1], index: 1, kind: input, shape index: {}]
  %s2 = inlined_call_operand.vmem [shape: f32[4,1], index: 2, kind: input, shape index: {}]
  %s3 = inlined_call_operand.hbm [shape: f32[2,4,256], index: 3, kind: output, shape index: {0}]
  %s4 = inlined_call_operand.vmem [shape: f32[4,1], index: 4, kind: output, shape index: {1}]
  %s5 = inlined_call_operand.vmem [shape: f32[4,1], index: 5, kind: output, shape index: {2}]
  %6 = xla_tuple %s3, %s4, %s5
  %s7 = sld [smem:[#allocation0]]
  $region42: #{tpu_custom_call.1} parent=0
    _
  %s9 = ssub.s32 1, %s7
  %s10 = scalar_select 0, %s9, %s7
  $region1: #{tpu_custom_call.1} parent=0
    #allocation2 [shape = 'u8[8192]{0}', space=vmem, size = 0x2000, scoped, tag = 'input window, operand 0, single buffered']
    #allocation3 [shape = 's32[1]{0}', space=sflag, size = 0x4, scoped, tag = 'scoped memory for tpu_custom_call.1']
    #allocation4 [shape = 's32[1]{0}', space=sflag, size = 0x4, scoped, tag = 'scoped memory for tpu_custom_call.1']
    #allocation5 [shape = 'u8[8192]{0}', space=vmem, size = 0x2000, scoped, tag = 'output window, operand 0, single buffered']
    %11 = vsyncpa [#allocation3], 0
    %12 = vsyncpa [#allocation4], 0
    // Predicated region
    $region2: #{tpu_custom_call.1} parent=1 // pred_check
      _
    $region3: #{tpu_custom_call.1} parent=1 // pred_check_branch
      %14 = sbr.rel (0) target = $region5
    $region4: #{tpu_custom_call.1} parent=1 // pred_region
      %16 = vsyncadd [#allocation3], 0
      %s17 = sshll.u32 %s0, 4
      %s18 = int_to_ptr.hbm [resolvable:$true] %s17
      %s19 = sshll.u32 [#allocation2], 4
      %s20 = int_to_ptr.vmem [resolvable:$true] %s19
      %25 = dma.hbm_to_vmem [thread:$0]  %s18, 256, %s20, [#allocation3], 128, 128, 8
    $region5: #{tpu_custom_call.1} parent=1 // pred_fallthru
      _
    // Predicated region
    $region6: #{tpu_custom_call.1} parent=1 // pred_check
      _
    $region7: #{tpu_custom_call.1} parent=1 // pred_check_branch
      %27 = sbr.rel (0) target = $region9
    $region8: #{tpu_custom_call.1} parent=1 // pred_region
      _
    $region9: #{tpu_custom_call.1} parent=1 // pred_fallthru
      _
    // Predicated region
    $region10: #{tpu_custom_call.1} parent=1 // pred_check
      _
    $region11: #{tpu_custom_call.1} parent=1 // pred_check_branch
      %29 = sbr.rel (0) target = $region13
    $region12: #{tpu_custom_call.1} parent=1 // pred_region
      _
    $region13: #{tpu_custom_call.1} parent=1 // pred_fallthru
      _
    // Predicated region
    $region14: #{tpu_custom_call.1} parent=1 // pred_check
      _
    $region15: #{tpu_custom_call.1} parent=1 // pred_check_branch
      %31 = sbr.rel (0) target = $region17
    $region16: #{tpu_custom_call.1} parent=1 // pred_region
      %33 = dma.done [#allocation3], 256
    $region17: #{tpu_custom_call.1} parent=1 // pred_fallthru
      _
    %v34 = vld [vmem:[#allocation2] sm:$0xff]
    %v35 = vld [vmem:[#allocation2 + $0x8] sm:$0xff]
    %38 = vst [vmem:[#allocation1] ss:$2 sm:$0xff] %v34
    %v39 = vld.sshfl [vmem:[#allocation1] sm:$0xff pattern:$0x75316420]
    %v40 = vld.sshfl [vmem:[#allocation1 + $0x8] sm:$0xff pattern:$0x75316420]
    %s41 = scalar_lea.vmem [#allocation1], 16
    %42 = vst [vmem:[%s41] ss:$2 sm:$0xff] %v35
    %v43 = vld.sshfl [vmem:[#allocation1 + $0x10] sm:$0xff pattern:$0x75316420]
    %v44 = vld.sshfl [vmem:[#allocation1 + $0x18] sm:$0xff pattern:$0x75316420]
    %vm49 = vcmask 1043456
    %v50 = vsel %vm49, %v39, 0.0
    %v51 = vsel %vm49, %v43, 0.0
    %v52 = vadd.f32 %v50, %v51
    %v53 = vsel %vm49, %v40, 0.0
    %v54 = vsel %vm49, %v44, 0.0
    %v55 = vadd.f32 %v53, %v54
    %v56 = vsel %vm49, %v52, 0.0
    %v57 = vsel %vm49, %v55, 0.0
    %v58 = vadd.f32 %v56, %v57
    %59 = vadd.xlane.f32.xlu0 %v58
    %v60 = vpop.xlane.xlu0 %59
    %v61 = vmul.f32 %v34, %v34
    %v62 = vmul.f32 %v35, %v35
    %65 = vst [vmem:[#allocation1] ss:$2 sm:$0xff] %v61
    %v66 = vld.sshfl [vmem:[#allocation1] sm:$0xff pattern:$0x75316420]
    %v67 = vld.sshfl [vmem:[#allocation1 + $0x8] sm:$0xff pattern:$0x75316420]
    %s68 = scalar_lea.vmem [#allocation1], 16
    %69 = vst [vmem:[%s68] ss:$2 sm:$0xff] %v62
    %v70 = vld.sshfl [vmem:[#allocation1 + $0x10] sm:$0xff pattern:$0x75316420]
    %v71 = vld.sshfl [vmem:[#allocation1 + $0x18] sm:$0xff pattern:$0x75316420]
    %v76 = vsel %vm49, %v66, 0.0
    %v77 = vsel %vm49, %v70, 0.0
    %v78 = vadd.f32 %v76, %v77
    %v79 = vsel %vm49, %v67, 0.0
    %v80 = vsel %vm49, %v71, 0.0
    %v81 = vadd.f32 %v79, %v80
    %v82 = vsel %vm49, %v78, 0.0
    %v83 = vsel %vm49, %v81, 0.0
    %v84 = vadd.f32 %v82, %v83
    %85 = vadd.xlane.f32.xlu0 %v84
    %v86 = vpop.xlane.xlu0 %85
    %v87 = vmul.f32 %v60, 0.001953125
    %v88 = vmul.f32 %v86, 0.001953125
    %v89 = vmul.f32 %v87, %v87
    %v90 = vsub.f32 %v88, %v89
    %v91 = vmax.f32 %v90, 0.0
    %v92 = vld [vmem:[%s1] sm:$0xf]
    %v93 = vadd.f32 %v91, 1e-05
    %v94 = vrsqrt.pop %v93
    %v95 = vmul.f32 %v94, %v93
    %v96 = vmul.f32 %v95, %v94
    %v97 = vmul.f32 0.5, %v96
    %v98 = vsub.f32 1.5, %v97
    %v99 = vmul.f32 %v94, %v98
    %vm100 = vweird.f32 %v93
    %vm101 = vweird.f32 %v94
    %vm102 = vmor %vm100, %vm101
    %v103 = vsel %vm102, %v94, %v99
    %v104 = vmul.f32 %v92, %v103
    %v105 = vld [vmem:[%s2] sm:$0xf]
    %v106 = vmul.f32 %v87, %v104
    %v107 = vsub.f32 %v105, %v106
    %109 = vset.pattern.permute.xlu0 0
    %110 = vperm.xlu0 %109, %v104
    %v111 = vpop.permute.xlu0 %110
    %v113 = vunpack.c.l.s4 839922192
    %v114 = vunpack.c.0.s8 %v113
    %v115 = vperm.slane %v111, %v114
    %v117 = vmul.f32 %v34, %v115
    %v118 = vmul.f32 %v35, %v115
    %120 = vset.pattern.permute.xlu0 0
    %121 = vperm.xlu0 %120, %v107
    %v122 = vpop.permute.xlu0 %121
    %v124 = vunpack.c.l.s4 839922192
    %v125 = vunpack.c.0.s8 %v124
    %v126 = vperm.slane %v122, %v125
    %v128 = vadd.f32 %v117, %v126
    %v129 = vadd.f32 %v118, %v126
    %130 = vst [vmem:[#allocation5] sm:$0xff] %v128
    %131 = vst [vmem:[#allocation5 + $0x8] sm:$0xff] %v129
    %vm132 = vcmask 3072
    %133 = vst.msk [vmem:[%s4] sm:$0xf] %vm132, %v87
    %134 = vst.msk [vmem:[%s5] sm:$0xf] %vm132, %v91
    // Predicated region
    $region18: #{tpu_custom_call.1} parent=1 // pred_check
      _
    $region19: #{tpu_custom_call.1} parent=1 // pred_check_branch
      %136 = sbr.rel (0) target = $region21
    $region20: #{tpu_custom_call.1} parent=1 // pred_region
      %138 = vsyncadd [#allocation4], 0
      %s139 = sshll.u32 [#allocation5], 4
      %s140 = int_to_ptr.vmem [resolvable:$true] %s139
      %s141 = sshll.u32 %s3, 4
      %s142 = int_to_ptr.hbm [resolvable:$true] %s141
      %147 = dma.vmem_to_hbm [thread:$0]  %s140, 256, %s142, [#allocation4], 128, 128, 8
    $region21: #{tpu_custom_call.1} parent=1 // pred_fallthru
      _
    // Predicated region
    $region22: #{tpu_custom_call.1} parent=1 // pred_check
      _
    $region23: #{tpu_custom_call.1} parent=1 // pred_check_branch
      %149 = sbr.rel (0) target = $region25
    $region24: #{tpu_custom_call.1} parent=1 // pred_region
      _
    $region25: #{tpu_custom_call.1} parent=1 // pred_fallthru
      _
    // Predicated region
    $region26: #{tpu_custom_call.1} parent=1 // pred_check
      _
    $region27: #{tpu_custom_call.1} parent=1 // pred_check_branch
      %151 = sbr.rel (0) target = $region29
    $region28: #{tpu_custom_call.1} parent=1 // pred_region
      _
    $region29: #{tpu_custom_call.1} parent=1 // pred_fallthru
      _
    // Predicated region
    $region30: #{tpu_custom_call.1} parent=1 // pred_check
      _
    $region31: #{tpu_custom_call.1} parent=1 // pred_check_branch
      %153 = sbr.rel (0) target = $region33
    $region32: #{tpu_custom_call.1} parent=1 // pred_region
      %155 = dma.done [#allocation4], 256
    $region33: #{tpu_custom_call.1} parent=1 // pred_fallthru
      _
    // Predicated region
    $region34: #{tpu_custom_call.1} parent=1 // pred_check
      _
    $region35: #{tpu_custom_call.1} parent=1 // pred_check_branch
      %157 = sbr.rel (0) target = $region37
    $region36: #{tpu_custom_call.1} parent=1 // pred_region
      _
    $region37: #{tpu_custom_call.1} parent=1 // pred_fallthru
      _
    // Predicated region
    $region38: #{tpu_custom_call.1} parent=1 // pred_check
      _
    $region39: #{tpu_custom_call.1} parent=1 // pred_check_branch
      %159 = sbr.rel (0) target = $region41
    $region40: #{tpu_custom_call.1} parent=1 // pred_region
      _
    $region41: #{tpu_custom_call.1} parent=1 // pred_fallthru
      _
    %160 = vsyncpa [#allocation3], 1
    %161 = vsyncpa [#allocation4], 1

</llo_original>
